<compile_context>
chip_gen: v5e
topology: v5e:2x2
jax: 0.10.0
libtpu: 0.0.40
codegen_flags: <defaults>
</compile_context>

<pallas_src>
import functools

import jax
import jax.numpy as jnp
from jax import lax
from jax.experimental import pallas as pl
from jax.experimental.pallas import tpu as pltpu


def _round_up(a, b):
    return (a + b - 1) // b * b


# dot_general dims: contract dim 1 of lhs with dim 1 of rhs (A @ B^T pattern,
# native on the MXU — same pattern as q @ k.T in attention kernels).
_CONTRACT_LAST = (((1,), (1,)), ((), ()))


def _icnn_kernel(L, H_pad, out_dim, strong_cvx, compute_dtype,
                 x_ref, wall_ref, ball_ref, cw_ref, lcw_ref, llw_ref, llb_ref,
                 o_ref):
    """Whole ICNN forward for one batch tile. All weights resident in VMEM."""
    x = x_ref[...].astype(jnp.float32)                       # (TB, D) f32
    x_c = x.astype(compute_dtype)

    # --- one wide MXU pass for every x-side projection ----------------------
    # columns [i*H_pad : i*H_pad+H] of xw hold  x @ W_i + b_i  for layer i;
    # each per-layer block is 128-lane aligned, padding columns are zero.
    xw = jnp.dot(x_c, wall_ref[...], preferred_element_type=jnp.float32)
    xw = xw + ball_ref[...]                                   # (TB, n_pad) f32

    # --- layer 1: relu(x @ W1 + b1) ** 2 -------------------------------------
    h = jnp.maximum(xw[:, 0:H_pad], 0.0)
    h = h * h                                                 # (TB, H_pad) f32

    # --- hidden convex layers (static unroll; L is small & static) ----------
    for i in range(L):
        conv = jnp.dot(h.astype(compute_dtype), cw_ref[i],
                       preferred_element_type=jnp.float32)
        h = jnp.maximum(conv + xw[:, (i + 1) * H_pad:(i + 2) * H_pad], 0.0)

    # --- head: last_convex(h) + last_linear(x) ** 2 (+ strong-convex) -------
    llb = llb_ref[0, 0]                                       # SMEM scalar
    if out_dim == 1:
        # Row form: batch rides the MXU N axis, so the output tile is a
        # lane-dense (1, TB) row and no transpose / XLU reduction is needed.
        lin = lax.dot_general(llw_ref[...], x, _CONTRACT_LAST,
                              preferred_element_type=jnp.float32) + llb
        out = lax.dot_general(lcw_ref[...], h.astype(compute_dtype),
                              _CONTRACT_LAST,
                              preferred_element_type=jnp.float32)   # (1, TB)
        out = out + lin * lin
        if strong_cvx:
            half = jnp.full(llw_ref.shape, 0.5, jnp.float32)        # (1, D)
            out = out + lax.dot_general(half, x * x, _CONTRACT_LAST,
                                        preferred_element_type=jnp.float32)
        o_ref[...] = out.astype(o_ref.dtype).reshape(o_ref.shape)   # (1,1,TB)
    else:
        # Column form for general out_dim.
        lin = lax.dot_general(x, llw_ref[...], _CONTRACT_LAST,
                              preferred_element_type=jnp.float32) + llb
        out = jnp.dot(h.astype(compute_dtype), lcw_ref[...],
                      preferred_element_type=jnp.float32)           # (TB, O)
        out = out + lin * lin
        if strong_cvx:
            half = jnp.full(llw_ref.shape, 0.5, jnp.float32)
            out = out + lax.dot_general(x * x, half, _CONTRACT_LAST,
                                        preferred_element_type=jnp.float32)
        o_ref[...] = out.astype(o_ref.dtype)


def icnn_forward(x, params, *, num_layer, strong_cvx=False,
                 block_batch=512, compute_dtype=jnp.float32):
    """Pallas wrapper. x: (B, input_dim) float32."""
    assert num_layer >= 2, "kernel assumes at least one hidden convex layer"
    B, D = x.shape
    w1, b1, nw, nb, cw, lcw, llw, llb = params
    H = w1.shape[1]
    out_dim = lcw.shape[1]
    L = num_layer - 1
    assert nw.shape == (L, D, H) and cw.shape == (L, H, H)

    # ---- lane-aligned fused x-side projections ------------------------------
    H_pad = _round_up(H, 128)
    pad_h = H_pad - H
    w_blocks = [w1] + [nw[i] for i in range(L)]
    b_blocks = [b1] + [nb[i] for i in range(L)]
    if pad_h:
        w_blocks = [jnp.pad(w, ((0, 0), (0, pad_h))) for w in w_blocks]
        b_blocks = [jnp.pad(b, ((0, 0), (0, pad_h))) for b in b_blocks]
    w_all = jnp.concatenate(w_blocks, axis=1).astype(compute_dtype)  # (D, n_pad)
    b_all = jnp.concatenate(b_blocks, axis=1).astype(jnp.float32)    # (1, n_pad)
    n_pad = (L + 1) * H_pad

    cw_p = jnp.pad(cw, ((0, 0), (0, pad_h), (0, pad_h))) if pad_h else cw
    cw_p = cw_p.astype(compute_dtype)                          # (L, H_pad, H_pad)

    llw_row = llw.reshape(1, D).astype(jnp.float32)   # f32: keeps lin accurate
    llb_s = llb.reshape(1, 1).astype(jnp.float32)

    if out_dim == 1:
        lcw_in = lcw.reshape(1, H)
        if pad_h:
            lcw_in = jnp.pad(lcw_in, ((0, 0), (0, pad_h)))
        lcw_in = lcw_in.astype(compute_dtype)                  # (1, H_pad)
    else:
        lcw_in = jnp.pad(lcw, ((0, pad_h), (0, 0))) if pad_h else lcw
        lcw_in = lcw_in.astype(compute_dtype)                  # (H_pad, out_dim)

    # ---- batch tile: fill the MXU, keep >=2 grid steps, fit the VMEM budget -
    out_cols = 1 if out_dim == 1 else out_dim
    weight_bytes = 2 * (w_all.size * w_all.dtype.itemsize       # double-buffered
                        + b_all.size * 4
                        + cw_p.size * cw_p.dtype.itemsize
                        + lcw_in.size * lcw_in.dtype.itemsize
                        + llw_row.size * 4)

    def vmem_est(tb):
        io = 2 * tb * (D + out_cols) * 4                 # pipelined x/out tiles
        live = tb * n_pad * 4 + 3 * tb * H_pad * 4       # xw + h + matmul temps
        return weight_bytes + io + live

    try:
        phys_vmem = int(pltpu.get_tpu_info().vmem_capacity_bytes)
    except Exception:                                    # conservative: v7x
        phys_vmem = 64 * 1024 * 1024
    budget = int(phys_vmem * 0.70)

    B8 = _round_up(B, 8)
    tb = min(_round_up(block_batch, 8), B8)
    if B8 >= 16:                         # v7x has 2 TCs: give both a tile
        tb = min(tb, _round_up((B8 + 1) // 2, 8))
    if tb > 128:
        tb = (tb // 128) * 128           # keep large tiles lane-aligned
    while tb > 128 and vmem_est(tb) > budget:
        tb -= 128
    TB = max(tb, 8)

    B_pad = _round_up(B, TB)
    x_p = jnp.pad(x, ((0, B_pad - B), (0, 0))) if B_pad != B else x
    n_tiles = B_pad // TB

    vmem_limit = int(min(phys_vmem * 0.85,
                         max(2 * vmem_est(TB), 32 * 1024 * 1024)))

    def full(shape):
        return pl.BlockSpec(shape, lambda i: (0,) * len(shape))

    kernel = functools.partial(_icnn_kernel, L, H_pad, out_dim, strong_cvx,
                               compute_dtype)

    if out_dim == 1:
        # Lane-dense output: one (1, 1, TB) row per grid step (batch on lanes).
        out_shape = jax.ShapeDtypeStruct((n_tiles, 1, TB), x.dtype)
        out_spec = pl.BlockSpec((1, 1, TB), lambda i: (i, 0, 0))
    else:
        out_shape = jax.ShapeDtypeStruct((B_pad, out_dim), x.dtype)
        out_spec = pl.BlockSpec((TB, out_dim), lambda i: (i, 0))

    flops = 2 * B_pad * (D * n_pad + L * H_pad * H_pad
                         + H_pad * out_cols + 2 * D)
    bytes_accessed = (x_p.size * x_p.dtype.itemsize
                      + w_all.size * w_all.dtype.itemsize
                      + b_all.size * 4
                      + cw_p.size * cw_p.dtype.itemsize
                      + lcw_in.size * lcw_in.dtype.itemsize
                      + llw_row.size * 4 + 4
                      + B_pad * out_cols * x.dtype.itemsize)

    out = pl.pallas_call(
        kernel,
        out_shape=out_shape,
        grid=(n_tiles,),
        in_specs=[
            pl.BlockSpec((TB, D), lambda i: (i, 0)),             # x batch tile
            full((D, n_pad)),                                    # fused x-side W
            full((1, n_pad)),                                    # fused biases
            full((L, H_pad, H_pad)),                             # convex weights
            full(lcw_in.shape),                                  # last_convex
            full((1, D)),                                        # last_linear W
            pl.BlockSpec(memory_space=pltpu.MemorySpace.SMEM),   # last_linear b
        ],
        out_specs=out_spec,
        compiler_params=pltpu.CompilerParams(
            dimension_semantics=("parallel",),
            vmem_limit_bytes=vmem_limit,
        ),
        cost_estimate=pl.CostEstimate(
            flops=int(flops), transcendentals=0,
            bytes_accessed=int(bytes_accessed)),
    )(x_p, w_all, b_all, cw_p, lcw_in, llw_row, llb_s)

    if out_dim == 1:
        return out.reshape(B_pad)[:B].reshape(B, 1)
    return out[:B]


def make_params(key, input_dim, hidden_dim, num_layer, out_dim=1):
    """Deterministic synthetic parameters (shapes match the PyTorch module)."""
    L = num_layer - 1
    ks = jax.random.split(key, 8)
    scale = 0.3
    w1 = scale * jax.random.normal(ks[0], (input_dim, hidden_dim), jnp.float32)
    b1 = scale * jax.random.normal(ks[1], (1, hidden_dim), jnp.float32)
    nw = scale * jax.random.normal(ks[2], (L, input_dim, hidden_dim), jnp.float32)
    nb = scale * jax.random.normal(ks[3], (L, 1, hidden_dim), jnp.float32)
    # ConvexLinear weights: keep them non-negative (ICNN convention).
    cw = jnp.abs(scale * jax.random.normal(ks[4], (L, hidden_dim, hidden_dim), jnp.float32))
    lcw = jnp.abs(scale * jax.random.normal(ks[5], (hidden_dim, out_dim), jnp.float32))
    llw = scale * jax.random.normal(ks[6], (input_dim, 1), jnp.float32)
    llb = scale * jax.random.normal(ks[7], (1, 1), jnp.float32)
    # Note: self.w0 / self.w1 of the PyTorch module are unused in forward().
    return (w1, b1, nw, nb, cw, lcw, llw, llb)


def icnn_reference(x, params, *, num_layer, strong_cvx=False):
    """Pure-JAX reference of the PyTorch forward (activation='relu')."""
    w1, b1, nw, nb, cw, lcw, llw, llb = params
    h = jnp.maximum(x @ w1 + b1, 0.0) ** 2
    for i in range(num_layer - 1):
        h = jnp.maximum(h @ cw[i] + x @ nw[i] + nb[i], 0.0)
    lin = x @ llw + llb
    out = h @ lcw + lin ** 2
    if strong_cvx:
        out = out + 0.5 * jnp.sum(x * x, axis=1, keepdims=True)
    return out


if __name__ == "__main__":
    input_dim = 16
    hidden_dim = 32
    num_layer = 3
    batch = 200          # not a multiple of the batch tile -> exercises pad/tiling

    key = jax.random.PRNGKey(0)
    kx, kp = jax.random.split(key)
    x = jax.random.normal(kx, (batch, input_dim), jnp.float32)

    # --- out_dim == 1 (lane-dense output path), f32, strong_cvx off / on ----
    params = make_params(kp, input_dim, hidden_dim, num_layer, out_dim=1)
    for strong_cvx in (False, True):
        out = jax.block_until_ready(
            icnn_forward(x, params, num_layer=num_layer, strong_cvx=strong_cvx))
        ref = icnn_reference(x, params, num_layer=num_layer, strong_cvx=strong_cvx)
        assert out.shape == (batch, 1)
        # Tolerance allows for the MXU's reduced-precision f32 passes.
        assert jnp.allclose(out, ref, atol=2e-3, rtol=2e-3), float(
            jnp.max(jnp.abs(out - ref)))

    # --- out_dim > 1 (column output path), f32 -------------------------------
    params4 = make_params(kp, input_dim, hidden_dim, num_layer, out_dim=4)
    out4 = jax.block_until_ready(
        icnn_forward(x, params4, num_layer=num_layer))
    ref4 = icnn_reference(x, params4, num_layer=num_layer)
    assert out4.shape == (batch, 4)
    assert jnp.allclose(out4, ref4, atol=2e-3, rtol=2e-3), float(
        jnp.max(jnp.abs(out4 - ref4)))

    # --- bf16-weight path (halved weight VMEM/DMA, f32 accumulation) ---------
    out_bf16 = jax.block_until_ready(
        icnn_forward(x, params, num_layer=num_layer, compute_dtype=jnp.bfloat16))
    ref = icnn_reference(x, params, num_layer=num_layer)
    rel = float(jnp.max(jnp.abs(out_bf16 - ref)) / (jnp.max(jnp.abs(ref)) + 1e-6))
    assert rel < 0.1, rel

    print("KERNEL_OK")
</pallas_src>

<mosaic_0001>
module attributes {stable_mosaic.version = 11 : i64} {
  func.func @_icnn_kernel(%arg0: i32, %arg1: memref<104x16xf32, #tpu.memory_space<vmem>>, %arg2: memref<16x384xf32, #tpu.memory_space<vmem>>, %arg3: memref<1x384xf32, #tpu.memory_space<vmem>>, %arg4: memref<2x128x128xf32, #tpu.memory_space<vmem>>, %arg5: memref<1x128xf32, #tpu.memory_space<vmem>>, %arg6: memref<1x16xf32, #tpu.memory_space<vmem>>, %arg7: memref<1x1xf32, #tpu.memory_space<smem>>, %arg8: memref<1x1x104xf32, #tpu.memory_space<vmem>>) attributes {dimension_semantics = [#tpu.dimension_semantics<parallel>], iteration_bounds = array<i64: 2>, scalar_prefetch = 0 : i64, scratch_operands = 0 : i64, tpu.core_type = #tpu.core_type<tc>, window_params = [{transform_indices = @transform_0, window_bounds = array<i64: 104, 16>}, {pipeline_mode = #tpu.pipeline_mode<synchronous>, transform_indices = @transform_1, window_bounds = array<i64: 16, 384>}, {pipeline_mode = #tpu.pipeline_mode<synchronous>, transform_indices = @transform_2, window_bounds = array<i64: 1, 384>}, {pipeline_mode = #tpu.pipeline_mode<synchronous>, transform_indices = @transform_3, window_bounds = array<i64: 2, 128, 128>}, {pipeline_mode = #tpu.pipeline_mode<synchronous>, transform_indices = @transform_4, window_bounds = array<i64: 1, 128>}, {pipeline_mode = #tpu.pipeline_mode<synchronous>, transform_indices = @transform_5, window_bounds = array<i64: 1, 16>}, {transform_indices = @transform_6, window_bounds = array<i64: 1, 1>}, {transform_indices = @transform_7, window_bounds = array<i64: 1, 1, 104>}]} {
    %c0 = arith.constant 0 : index
    %c0_0 = arith.constant 0 : index
    %0 = vector.load %arg1[%c0, %c0_0] : memref<104x16xf32, #tpu.memory_space<vmem>>, vector<104x16xf32>
    %c0_1 = arith.constant 0 : index
    %c0_2 = arith.constant 0 : index
    %1 = vector.load %arg2[%c0_1, %c0_2] : memref<16x384xf32, #tpu.memory_space<vmem>>, vector<16x384xf32>
    %cst = arith.constant dense<0.000000e+00> : vector<104x384xf32>
    %2 = tpu.matmul %0, %1, %cst {dimension_numbers = #tpu.dot_dimension_numbers<[1], [0], [0], [1], [0, 0, 1, 1], [], []>} : vector<104x16xf32>, vector<16x384xf32>, vector<104x384xf32> -> vector<104x384xf32>
    %c0_3 = arith.constant 0 : index
    %c0_4 = arith.constant 0 : index
    %3 = vector.load %arg3[%c0_3, %c0_4] : memref<1x384xf32, #tpu.memory_space<vmem>>, vector<1x384xf32>
    %4 = vector.broadcast %3 : vector<1x384xf32> to vector<104x384xf32>
    %5 = arith.addf %2, %4 : vector<104x384xf32>
    %6 = vector.extract_strided_slice %5 {offsets = [0, 0], sizes = [104, 128], strides = [1, 1]} : vector<104x384xf32> to vector<104x128xf32>
    %cst_5 = arith.constant 0.000000e+00 : f32
    %7 = vector.broadcast %cst_5 : f32 to vector<104x128xf32>
    %8 = arith.maximumf %6, %7 : vector<104x128xf32>
    %9 = arith.mulf %8, %8 : vector<104x128xf32>
    %c0_6 = arith.constant 0 : index
    %c0_7 = arith.constant 0 : index
    %c0_8 = arith.constant 0 : index
    %10 = vector.load %arg4[%c0_6, %c0_7, %c0_8] : memref<2x128x128xf32, #tpu.memory_space<vmem>>, vector<1x128x128xf32>
    %11 = vector.shape_cast %10 : vector<1x128x128xf32> to vector<128x128xf32>
    %cst_9 = arith.constant dense<0.000000e+00> : vector<104x128xf32>
    %12 = tpu.matmul %9, %11, %cst_9 {dimension_numbers = #tpu.dot_dimension_numbers<[1], [0], [0], [1], [0, 0, 1, 1], [], []>} : vector<104x128xf32>, vector<128x128xf32>, vector<104x128xf32> -> vector<104x128xf32>
    %13 = vector.extract_strided_slice %5 {offsets = [0, 128], sizes = [104, 128], strides = [1, 1]} : vector<104x384xf32> to vector<104x128xf32>
    %14 = arith.addf %12, %13 : vector<104x128xf32>
    %cst_10 = arith.constant 0.000000e+00 : f32
    %15 = vector.broadcast %cst_10 : f32 to vector<104x128xf32>
    %16 = arith.maximumf %14, %15 : vector<104x128xf32>
    %c1 = arith.constant 1 : index
    %c0_11 = arith.constant 0 : index
    %c0_12 = arith.constant 0 : index
    %17 = vector.load %arg4[%c1, %c0_11, %c0_12] : memref<2x128x128xf32, #tpu.memory_space<vmem>>, vector<1x128x128xf32>
    %18 = vector.shape_cast %17 : vector<1x128x128xf32> to vector<128x128xf32>
    %cst_13 = arith.constant dense<0.000000e+00> : vector<104x128xf32>
    %19 = tpu.matmul %16, %18, %cst_13 {dimension_numbers = #tpu.dot_dimension_numbers<[1], [0], [0], [1], [0, 0, 1, 1], [], []>} : vector<104x128xf32>, vector<128x128xf32>, vector<104x128xf32> -> vector<104x128xf32>
    %20 = vector.extract_strided_slice %5 {offsets = [0, 256], sizes = [104, 128], strides = [1, 1]} : vector<104x384xf32> to vector<104x128xf32>
    %21 = arith.addf %19, %20 : vector<104x128xf32>
    %cst_14 = arith.constant 0.000000e+00 : f32
    %22 = vector.broadcast %cst_14 : f32 to vector<104x128xf32>
    %23 = arith.maximumf %21, %22 : vector<104x128xf32>
    %c0_15 = arith.constant 0 : index
    %c0_16 = arith.constant 0 : index
    %24 = memref.load %arg7[%c0_15, %c0_16] : memref<1x1xf32, #tpu.memory_space<smem>>
    %c0_17 = arith.constant 0 : index
    %c0_18 = arith.constant 0 : index
    %25 = vector.load %arg6[%c0_17, %c0_18] : memref<1x16xf32, #tpu.memory_space<vmem>>, vector<1x16xf32>
    %cst_19 = arith.constant dense<0.000000e+00> : vector<1x104xf32>
    %26 = tpu.matmul %25, %0, %cst_19 {dimension_numbers = #tpu.dot_dimension_numbers<[1], [1], [0], [0], [0, 0, 1, 0], [], []>} : vector<1x16xf32>, vector<104x16xf32>, vector<1x104xf32> -> vector<1x104xf32>
    %27 = vector.broadcast %24 : f32 to vector<1x104xf32>
    %28 = arith.addf %26, %27 : vector<1x104xf32>
    %c0_20 = arith.constant 0 : index
    %c0_21 = arith.constant 0 : index
    %29 = vector.load %arg5[%c0_20, %c0_21] : memref<1x128xf32, #tpu.memory_space<vmem>>, vector<1x128xf32>
    %cst_22 = arith.constant dense<0.000000e+00> : vector<1x104xf32>
    %30 = tpu.matmul %29, %23, %cst_22 {dimension_numbers = #tpu.dot_dimension_numbers<[1], [1], [0], [0], [0, 0, 1, 0], [], []>} : vector<1x128xf32>, vector<104x128xf32>, vector<1x104xf32> -> vector<1x104xf32>
    %31 = arith.mulf %28, %28 : vector<1x104xf32>
    %32 = arith.addf %30, %31 : vector<1x104xf32>
    %33 = vector.shape_cast %32 : vector<1x104xf32> to vector<1x1x104xf32>
    %c0_23 = arith.constant 0 : index
    %c0_24 = arith.constant 0 : index
    %c0_25 = arith.constant 0 : index
    %34 = vector.load %arg8[%c0_23, %c0_24, %c0_25] : memref<1x1x104xf32, #tpu.memory_space<vmem>>, vector<1x1x104xf32>
    tpu.vector_store %arg8[%c0_23, %c0_24, %c0_25], %33 {strides = array<i32>} : memref<1x1x104xf32, #tpu.memory_space<vmem>>, vector<1x1x104xf32>,
    return
  }
  func.func @transform_0(%arg0: i32) -> (i32, i32) {
    %c0_i32 = arith.constant 0 : i32
    %c0_i32_0 = arith.constant 0 : i32
    return %arg0, %c0_i32 : i32, i32
  }
  func.func @transform_1(%arg0: i32) -> (i32, i32) {
    %c0_i32 = arith.constant 0 : i32
    %c0_i32_0 = arith.constant 0 : i32
    %c0_i32_1 = arith.constant 0 : i32
    return %c0_i32, %c0_i32_0 : i32, i32
  }
  func.func @transform_2(%arg0: i32) -> (i32, i32) {
    %c0_i32 = arith.constant 0 : i32
    %c0_i32_0 = arith.constant 0 : i32
    %c0_i32_1 = arith.constant 0 : i32
    return %c0_i32, %c0_i32_0 : i32, i32
  }
  func.func @transform_3(%arg0: i32) -> (i32, i32, i32) {
    %c0_i32 = arith.constant 0 : i32
    %c0_i32_0 = arith.constant 0 : i32
    %c0_i32_1 = arith.constant 0 : i32
    %c0_i32_2 = arith.constant 0 : i32
    return %c0_i32, %c0_i32_0, %c0_i32_1 : i32, i32, i32
  }
  func.func @transform_4(%arg0: i32) -> (i32, i32) {
    %c0_i32 = arith.constant 0 : i32
    %c0_i32_0 = arith.constant 0 : i32
    %c0_i32_1 = arith.constant 0 : i32
    return %c0_i32, %c0_i32_0 : i32, i32
  }
  func.func @transform_5(%arg0: i32) -> (i32, i32) {
    %c0_i32 = arith.constant 0 : i32
    %c0_i32_0 = arith.constant 0 : i32
    %c0_i32_1 = arith.constant 0 : i32
    return %c0_i32, %c0_i32_0 : i32, i32
  }
  func.func @transform_6(%arg0: i32) -> (i32, i32) {
    %c0_i32 = arith.constant 0 : i32
    %c0_i32_0 = arith.constant 0 : i32
    %c0_i32_1 = arith.constant 0 : i32
    return %c0_i32, %c0_i32_0 : i32, i32
  }
  func.func @transform_7(%arg0: i32) -> (i32, i32, i32) {
    %c0_i32 = arith.constant 0 : i32
    %c0_i32_0 = arith.constant 0 : i32
    %c0_i32_1 = arith.constant 0 : i32
    return %arg0, %c0_i32, %c0_i32_0 : i32, i32, i32
  }
}

</mosaic_0001>

<llo_original>
// kernel: tpu_custom_call.1
$region0: #{tpu_custom_call.1}
  #allocation0 [shape = 'u32[]', space=smem, size = 0x4, offset = 0x4, fixed_abs, tag = 'smem constant byte address 0x4 - core index']
  #allocation1 [shape = 'u32[72,128]{1,0:T(1,128)}', space=vmem, size = 0x9000, scoped, tag = 'internal scratch']
  #allocation2 [shape = 'f32[1,1]{1,0:T(1,128)S(6)}', space=smem, size = 0x200, scoped, tag = 'scoped memory for tpu_custom_call.1']
  %s0 = inlined_call_operand.vmem [shape: f32[208,16], index: 0, kind: input, shape index: {}]
  %s1 = inlined_call_operand.vmem [shape: f32[16,384], index: 1, kind: input, shape index: {}]
  %s2 = inlined_call_operand.vmem [shape: f32[1,384], index: 2, kind: input, shape index: {}]
  %s3 = inlined_call_operand.hbm [shape: f32[2,128,128], index: 3, kind: input, shape index: {}]
  %s4 = inlined_call_operand.vmem [shape: f32[1,128], index: 4, kind: input, shape index: {}]
  %s5 = inlined_call_operand.vmem [shape: f32[1,16], index: 5, kind: input, shape index: {}]
  %s6 = inlined_call_operand.<no memory space> [shape: f32[1,1], index: 6, kind: input, shape index: {}]
  %s7 = inlined_call_operand.hbm [shape: f32[2,1,104], index: 7, kind: output, shape index: {}]
  %s8 = sld [smem:[#allocation0]]
  $region65: #{tpu_custom_call.1} parent=0
    _
  %s10 = ssub.s32 1, %s8
  %s11 = scalar_select 0, %s10, %s8
  %12 = sst [smem:[#allocation2]] %s6
  $region1: #{tpu_custom_call.1} parent=0
    #allocation3 [shape = 'u8[131072]{0}', space=vmem, size = 0x20000, scoped, tag = 'input window, operand 3, single buffered']
    #allocation4 [shape = 's32[2]{0}', space=sflag, size = 0x8, scoped, tag = 'scoped memory for tpu_custom_call.1']
    #allocation5 [shape = 's32[2]{0}', space=sflag, size = 0x8, scoped, tag = 'scoped memory for tpu_custom_call.1']
    #allocation6 [shape = 'u8[1024]{0}', space=vmem, size = 0x400, scoped, tag = 'output window, operand 0']
    %13 = vsyncpa [#allocation4], 0
    %14 = vsyncpa [#allocation5], 0
    %s15 = scalar_lea.sflag [#allocation5], 1
    %16 = vsyncpa %s15, 0
    loop: start=0, step=1, limit=4
    $region2: #{tpu_custom_call.1} parent=1 // loop_pre_header
      _
    $region3: #{tpu_custom_call.1} parent=1 // loop_header
      %s18 = sphi 0, %s22
      %p19 = scmp.ge.s32.totalorder %s18, 4
      %s28 = sphi 0, %s30
      %s31 = sphi 0, %s28
      %s32 = sphi 0, %s31
      %s48 = sphi 0, %s32
      %s52 = sphi 0, %s52
      %s54 = sphi 0, %s52
      %s55 = sphi 0, %s54
      %s69 = sphi 0, %s55
      %s73 = sphi 0, %s73
      %s75 = sphi 0, %s73
      %s76 = sphi 0, %s75
      %s90 = sphi 0, %s76
      %s94 = sphi 0, %s94
      %s96 = sphi 0, %s94
      %s97 = sphi 0, %s96
      %s111 = sphi 0, %s97
      %s115 = sphi 0, %s115
      %s117 = sphi 0, %s115
      %s118 = sphi 0, %s117
      %s132 = sphi 0, %s118
      %s136 = sphi 0, %s136
      %s138 = sphi 0, %s136
      %s139 = sphi 0, %s138
      %s153 = sphi 0, %s139
      %s157 = sphi 0, %s157
      %s159 = sphi 0, %s157
      %s160 = sphi 0, %s159
      %s174 = sphi 0, %s160
      %s180 = sphi 0, %s182
      %s183 = sphi 0, %s180
      %s184 = sphi 0, %s183
      %s200 = sphi 0, %s184
    $region4: #{tpu_custom_call.1} parent=1 // loop_header_branch
      %21 = sbr.rel (%p19) target = $region8
    $region5: #{tpu_custom_call.1} parent=1 // loop_body
      %s23 = ssub.s32 %s18, 1
      %s24 = ssub.s32 %s18, 2
      %s25 = sadd.s32 %s18, 1
      %s26 = ssub.s32 %s18, %s25
      %p27 = scmp.eq.s32.totalorder %s26, 0
      %s29 = sadd.s32 %s28, 1
      %s30 = scalar_select %p27, %s28, %s29
      %p33 = pneg %p27
      %p34 = scmp.eq.s32.totalorder %s18, 1
      %p35 = por %p33, %p34
      %p36 = scmp.ne.s32.totalorder %s28, %s31
      %p37 = scmp.eq.s32.totalorder %s18, 0
      %p38 = por %p36, %p37
      %p39 = scmp.ne.s32.totalorder %s28, %s31
      %p40 = scmp.eq.s32.totalorder %s23, 1
      %p41 = por %p39, %p40
      %p42 = scmp.ne.s32.totalorder %s31, %s32
      %p43 = scmp.eq.s32.totalorder %s23, 0
      %p44 = por %p42, %p43
      %p45 = scmp.ne.s32.totalorder %s31, %s32
      %p46 = scmp.eq.s32.totalorder %s24, 1
      %p47 = por %p45, %p46
      %p49 = scmp.ne.s32.totalorder %s32, %s48
      %p50 = scmp.eq.s32.totalorder %s24, 0
      %p51 = por %p49, %p50
      %s53 = sadd.s32 %s52, 1
      %p56 = scmp.eq.s32.totalorder %s18, 1
      %p57 = scmp.ne.s32.totalorder %s52, %s54
      %p58 = scmp.eq.s32.totalorder %s18, 0
      %p59 = por %p57, %p58
      %p60 = scmp.ne.s32.totalorder %s52, %s54
      %p61 = scmp.eq.s32.totalorder %s23, 1
      %p62 = por %p60, %p61
      %p63 = scmp.ne.s32.totalorder %s54, %s55
      %p64 = scmp.eq.s32.totalorder %s23, 0
      %p65 = por %p63, %p64
      %p66 = scmp.ne.s32.totalorder %s54, %s55
      %p67 = scmp.eq.s32.totalorder %s24, 1
      %p68 = por %p66, %p67
      %p70 = scmp.ne.s32.totalorder %s55, %s69
      %p71 = scmp.eq.s32.totalorder %s24, 0
      %p72 = por %p70, %p71
      %s74 = sadd.s32 %s73, 1
      %p77 = scmp.eq.s32.totalorder %s18, 1
      %p78 = scmp.ne.s32.totalorder %s73, %s75
      %p79 = scmp.eq.s32.totalorder %s18, 0
      %p80 = por %p78, %p79
      %p81 = scmp.ne.s32.totalorder %s73, %s75
      %p82 = scmp.eq.s32.totalorder %s23, 1
      %p83 = por %p81, %p82
      %p84 = scmp.ne.s32.totalorder %s75, %s76
      %p85 = scmp.eq.s32.totalorder %s23, 0
      %p86 = por %p84, %p85
      %p87 = scmp.ne.s32.totalorder %s75, %s76
      %p88 = scmp.eq.s32.totalorder %s24, 1
      %p89 = por %p87, %p88
      %p91 = scmp.ne.s32.totalorder %s76, %s90
      %p92 = scmp.eq.s32.totalorder %s24, 0
      %p93 = por %p91, %p92
      %s95 = sadd.s32 %s94, 1
      %p98 = scmp.eq.s32.totalorder %s18, 1
      %p99 = scmp.ne.s32.totalorder %s94, %s96
      %p100 = scmp.eq.s32.totalorder %s18, 0
      %p101 = por %p99, %p100
      %p102 = scmp.ne.s32.totalorder %s94, %s96
      %p103 = scmp.eq.s32.totalorder %s23, 1
      %p104 = por %p102, %p103
      %p105 = scmp.ne.s32.totalorder %s96, %s97
      %p106 = scmp.eq.s32.totalorder %s23, 0
      %p107 = por %p105, %p106
      %p108 = scmp.ne.s32.totalorder %s96, %s97
      %p109 = scmp.eq.s32.totalorder %s24, 1
      %p110 = por %p108, %p109
      %p112 = scmp.ne.s32.totalorder %s97, %s111
      %p113 = scmp.eq.s32.totalorder %s24, 0
      %p114 = por %p112, %p113
      %s116 = sadd.s32 %s115, 1
      %p119 = scmp.eq.s32.totalorder %s18, 1
      %p120 = scmp.ne.s32.totalorder %s115, %s117
      %p121 = scmp.eq.s32.totalorder %s18, 0
      %p122 = por %p120, %p121
      %p123 = scmp.ne.s32.totalorder %s115, %s117
      %p124 = scmp.eq.s32.totalorder %s23, 1
      %p125 = por %p123, %p124
      %p126 = scmp.ne.s32.totalorder %s117, %s118
      %p127 = scmp.eq.s32.totalorder %s23, 0
      %p128 = por %p126, %p127
      %p129 = scmp.ne.s32.totalorder %s117, %s118
      %p130 = scmp.eq.s32.totalorder %s24, 1
      %p131 = por %p129, %p130
      %p133 = scmp.ne.s32.totalorder %s118, %s132
      %p134 = scmp.eq.s32.totalorder %s24, 0
      %p135 = por %p133, %p134
      %s137 = sadd.s32 %s136, 1
      %p140 = scmp.eq.s32.totalorder %s18, 1
      %p141 = scmp.ne.s32.totalorder %s136, %s138
      %p142 = scmp.eq.s32.totalorder %s18, 0
      %p143 = por %p141, %p142
      %p144 = scmp.ne.s32.totalorder %s136, %s138
      %p145 = scmp.eq.s32.totalorder %s23, 1
      %p146 = por %p144, %p145
      %p147 = scmp.ne.s32.totalorder %s138, %s139
      %p148 = scmp.eq.s32.totalorder %s23, 0
      %p149 = por %p147, %p148
      %p150 = scmp.ne.s32.totalorder %s138, %s139
      %p151 = scmp.eq.s32.totalorder %s24, 1
      %p152 = por %p150, %p151
      %p154 = scmp.ne.s32.totalorder %s139, %s153
      %p155 = scmp.eq.s32.totalorder %s24, 0
      %p156 = por %p154, %p155
      %s158 = sadd.s32 %s157, 1
      %p161 = scmp.eq.s32.totalorder %s18, 1
      %p162 = scmp.ne.s32.totalorder %s157, %s159
      %p163 = scmp.eq.s32.totalorder %s18, 0
      %p164 = por %p162, %p163
      %p165 = scmp.ne.s32.totalorder %s157, %s159
      %p166 = scmp.eq.s32.totalorder %s23, 1
      %p167 = por %p165, %p166
      %p168 = scmp.ne.s32.totalorder %s159, %s160
      %p169 = scmp.eq.s32.totalorder %s23, 0
      %p170 = por %p168, %p169
      %p171 = scmp.ne.s32.totalorder %s159, %s160
      %p172 = scmp.eq.s32.totalorder %s24, 1
      %p173 = por %p171, %p172
      %p175 = scmp.ne.s32.totalorder %s160, %s174
      %p176 = scmp.eq.s32.totalorder %s24, 0
      %p177 = por %p175, %p176
      %s178 = ssub.s32 %s18, %s25
      %p179 = scmp.eq.s32.totalorder %s178, 0
      %s181 = sadd.s32 %s180, 1
      %s182 = scalar_select %p179, %s180, %s181
      %p185 = pneg %p179
      %p186 = scmp.eq.s32.totalorder %s18, 1
      %p187 = por %p185, %p186
      %p188 = scmp.ne.s32.totalorder %s180, %s183
      %p189 = scmp.eq.s32.totalorder %s18, 0
      %p190 = por %p188, %p189
      %p191 = scmp.ne.s32.totalorder %s180, %s183
      %p192 = scmp.eq.s32.totalorder %s23, 1
      %p193 = por %p191, %p192
      %p194 = scmp.ne.s32.totalorder %s183, %s184
      %p195 = scmp.eq.s32.totalorder %s23, 0
      %p196 = por %p194, %p195
      %p197 = scmp.ne.s32.totalorder %s183, %s184
      %p198 = scmp.eq.s32.totalorder %s24, 1
      %p199 = por %p197, %p198
      %p201 = scmp.ne.s32.totalorder %s184, %s200
      %p202 = scmp.eq.s32.totalorder %s24, 0
      %p203 = por %p201, %p202
      %p204 = scmp.le.s32.totalorder 1, %s18
      %p205 = scmp.lt.s32.totalorder %s18, 3
      %p206 = pnand %p204, %p205
      %p207 = pneg %p206
      // Predicated region
      $region9: #{tpu_custom_call.1} parent=5 // pred_check
        _
      $region10: #{tpu_custom_call.1} parent=5 // pred_check_branch
        %209 = sbr.rel (%p206) target = $region12
      $region11: #{tpu_custom_call.1} parent=5 // pred_region
        %s210 = ssub.s32 %s18, 1
        // Predicated region
        $region13: #{tpu_custom_call.1} parent=11 // pred_check
          %p211 = pneg %p65
        $region14: #{tpu_custom_call.1} parent=11 // pred_check_branch
          %213 = sbr.rel (%p211) target = $region16
        $region15: #{tpu_custom_call.1} parent=11 // pred_region
          _
        $region16: #{tpu_custom_call.1} parent=11 // pred_fallthru
          _
        // Predicated region
        $region17: #{tpu_custom_call.1} parent=11 // pred_check
          %p214 = pneg %p86
        $region18: #{tpu_custom_call.1} parent=11 // pred_check_branch
          %216 = sbr.rel (%p214) target = $region20
        $region19: #{tpu_custom_call.1} parent=11 // pred_region
          _
        $region20: #{tpu_custom_call.1} parent=11 // pred_fallthru
          _
        // Predicated region
        $region21: #{tpu_custom_call.1} parent=11 // pred_check
          %p217 = pneg %p107
        $region22: #{tpu_custom_call.1} parent=11 // pred_check_branch
          %219 = sbr.rel (%p217) target = $region24
        $region23: #{tpu_custom_call.1} parent=11 // pred_region
          %221 = vsyncadd [#allocation4], 0
          %s222 = sshll.u32 %s3, 4
          %s223 = int_to_ptr.hbm [resolvable:$true] %s222
          %s224 = sshll.u32 [#allocation3], 4
          %s225 = int_to_ptr.vmem [resolvable:$true] %s224
          %230 = dma.hbm_to_vmem [thread:$0]  %s223, 4096, %s225, [#allocation4], 128, 128, 8
        $region24: #{tpu_custom_call.1} parent=11 // pred_fallthru
          _
        // Predicated region
        $region25: #{tpu_custom_call.1} parent=11 // pred_check
          %p231 = pneg %p128
        $region26: #{tpu_custom_call.1} parent=11 // pred_check_branch
          %233 = sbr.rel (%p231) target = $region28
        $region27: #{tpu_custom_call.1} parent=11 // pred_region
          _
        $region28: #{tpu_custom_call.1} parent=11 // pred_fallthru
          _
        // Predicated region
        $region29: #{tpu_custom_call.1} parent=11 // pred_check
          %p234 = pneg %p149
        $region30: #{tpu_custom_call.1} parent=11 // pred_check_branch
          %236 = sbr.rel (%p234) target = $region32
        $region31: #{tpu_custom_call.1} parent=11 // pred_region
          _
        $region32: #{tpu_custom_call.1} parent=11 // pred_fallthru
          _
        // Predicated region
        $region33: #{tpu_custom_call.1} parent=11 // pred_check
          %p237 = pneg %p170
        $region34: #{tpu_custom_call.1} parent=11 // pred_check_branch
          %239 = sbr.rel (%p237) target = $region36
        $region35: #{tpu_custom_call.1} parent=11 // pred_region
          _
        $region36: #{tpu_custom_call.1} parent=11 // pred_fallthru
          _
      $region12: #{tpu_custom_call.1} parent=5 // pred_fallthru
        _
      %p240 = scmp.lt.s32.totalorder %s18, 2
      // Predicated region
      $region37: #{tpu_custom_call.1} parent=5 // pred_check
        %p241 = pneg %p240
      $region38: #{tpu_custom_call.1} parent=5 // pred_check_branch
        %243 = sbr.rel (%p241) target = $region40
      $region39: #{tpu_custom_call.1} parent=5 // pred_region
        // Predicated region
        $region41: #{tpu_custom_call.1} parent=39 // pred_check
          %p244 = pneg %p38
        $region42: #{tpu_custom_call.1} parent=39 // pred_check_branch
          %246 = sbr.rel (%p244) target = $region44
        $region43: #{tpu_custom_call.1} parent=39 // pred_region
          %s247 = smul.u32 13, %s18
          %p248 = scmp.lt.s32.totalorder %s247, 25
          %s249 = scalar_select %p248, %s247, 25
          %s250 = smul.addr %s249, 8
          %s251 = scalar_lea.vmem %s0, %s250
          %s252 = smul.u32 13, %s18
        $region44: #{tpu_custom_call.1} parent=39 // pred_fallthru
          _
      $region40: #{tpu_custom_call.1} parent=5 // pred_fallthru
        _
      %p253 = scmp.le.s32.totalorder 1, %s18
      %p254 = scmp.lt.s32.totalorder %s18, 3
      %p255 = pnand %p253, %p254
      %p256 = pneg %p255
      // Predicated region
      $region45: #{tpu_custom_call.1} parent=5 // pred_check
        _
      $region46: #{tpu_custom_call.1} parent=5 // pred_check_branch
        %258 = sbr.rel (%p255) target = $region48
      $region47: #{tpu_custom_call.1} parent=5 // pred_region
        %s259 = ssub.s32 %s18, 1
        // Predicated region
        $region49: #{tpu_custom_call.1} parent=47 // pred_check
          %p260 = pneg %p107
        $region50: #{tpu_custom_call.1} parent=47 // pred_check_branch
          %262 = sbr.rel (%p260) target = $region52
        $region51: #{tpu_custom_call.1} parent=47 // pred_region
          %264 = dma.done [#allocation4], 4096
        $region52: #{tpu_custom_call.1} parent=47 // pred_fallthru
          _
        %s265 = smul.u32 13, %s23
        %p266 = scmp.lt.s32.totalorder %s265, 25
        %s267 = scalar_select %p266, %s265, 25
        %s268 = smul.addr %s267, 8
        %s269 = scalar_lea.vmem %s0, %s268
        %p270 = pneg %p44
        %p271 = pneg %p41
        %p272 = pneg %p65
        %p273 = pneg %p62
        %p274 = pneg %p86
        %p275 = pneg %p83
        %p276 = pneg %p107
        %p277 = pneg %p104
        %p278 = pneg %p128
        %p279 = pneg %p125
        %p280 = pneg %p149
        %p281 = pneg %p146
        %p282 = pneg %p170
        %p283 = pneg %p167
        %p284 = pneg %p196
        %p285 = pneg %p193
        %s286 = sand.u32 %s183, 1
        %s287 = scalar_lea.sflag [#allocation5], %s286
        %s288 = sand.u32 %s183, 1
        %s289 = scalar_lea.vmem [#allocation6], %s288
        %s290 = smul.u32 13, %s23
        %p291 = scmp.lt.s32.totalorder %s290, 25
        %s292 = scalar_select %p291, %s290, 25
        %s293 = smul.addr %s292, 8
        %s294 = scalar_lea.vmem %s0, %s293
        %s295 = smul.u32 13, %s23
        %v296 = vld [vmem:[%s294] sm:$0xff]
        %v297 = vld [vmem:[%s294 + $0x8] sm:$0xff]
        %v298 = vld [vmem:[%s294 + $0x10] sm:$0xff]
        %v299 = vld [vmem:[%s294 + $0x18] sm:$0xff]
        %v300 = vld [vmem:[%s294 + $0x20] sm:$0xff]
        %v301 = vld [vmem:[%s294 + $0x28] sm:$0xff]
        %v302 = vld [vmem:[%s294 + $0x30] sm:$0xff]
        %v303 = vld [vmem:[%s294 + $0x38] sm:$0xff]
        %v304 = vld [vmem:[%s294 + $0x40] sm:$0xff]
        %v305 = vld [vmem:[%s294 + $0x48] sm:$0xff]
        %v306 = vld [vmem:[%s294 + $0x50] sm:$0xff]
        %v307 = vld [vmem:[%s294 + $0x58] sm:$0xff]
        %v308 = vld [vmem:[%s294 + $0x60] sm:$0xff]
        %v309 = vld [vmem:[%s1] sm:$0xff]
        %v310 = vld [vmem:[%s1 + $0x8] sm:$0xff]
        %v311 = vld [vmem:[%s1 + $0x10] sm:$0xff]
        %v312 = vld [vmem:[%s1 + $0x18] sm:$0xff]
        %v313 = vld [vmem:[%s1 + $0x20] sm:$0xff]
        %v314 = vld [vmem:[%s1 + $0x28] sm:$0xff]
        %v315 = vld [vmem:[%s2] sm:$0x7]
        %v317 = vperm.slane %v315, 0
        %v318 = vperm.slane %v315, 1
        %v319 = vperm.slane %v315, 2
        %vm323 = vcmask 130048
        %v325 = vsel %vm323, %v296, 0
        %v328 = vsel %vm323, %v297, 0
        %v331 = vsel %vm323, %v298, 0
        %v334 = vsel %vm323, %v299, 0
        %v337 = vsel %vm323, %v300, 0
        %v340 = vsel %vm323, %v301, 0
        %v343 = vsel %vm323, %v302, 0
        %v346 = vsel %vm323, %v303, 0
        %v349 = vsel %vm323, %v304, 0
        %v352 = vsel %vm323, %v305, 0
        %v355 = vsel %vm323, %v306, 0
        %v358 = vsel %vm323, %v307, 0
        %v361 = vsel %vm323, %v308, 0
        %363 = vmatpush.msra.mxu0 0.0
        %364 = vmatpush.msra.mxu0 0.0
        %365 = vmatpush.msra.mxu0 0.0
        %366 = vmatpush.msra.mxu0 0.0
        %367 = vmatpush.msra.mxu0 0.0
        %368 = vmatpush.msra.mxu0 0.0
        %369 = vmatpush.msra.mxu0 0.0
        %370 = vmatpush.msra.mxu0 0.0
        %371 = vmatpush.msra.mxu0 0.0
        %372 = vmatpush.msra.mxu0 0.0
        %373 = vmatpush.msra.mxu0 0.0
        %374 = vmatpush.msra.mxu0 0.0
        %375 = vmatpush.msra.mxu0 0.0
        %376 = vmatpush.msra.mxu0 0.0
        %377 = vmatpush.msra.mxu0 %v312
        %378 = vmatpush.msra.mxu0 %v309
        %379 = vmatmul.f32.gmra.mxu0 %v325
        %v380 = vpop.f32.mrf.mxu0
        %v381 = vadd.f32 %v317, %v380
        %382 = vmatmul.f32.gmra.mxu0 %v328
        %v383 = vpop.f32.mrf.mxu0
        %v384 = vadd.f32 %v317, %v383
        %385 = vmatmul.f32.gmra.mxu0 %v331
        %v386 = vpop.f32.mrf.mxu0
        %v387 = vadd.f32 %v317, %v386
        %388 = vmatmul.f32.gmra.mxu0 %v334
        %v389 = vpop.f32.mrf.mxu0
        %v390 = vadd.f32 %v317, %v389
        %391 = vmatmul.f32.gmra.mxu0 %v337
        %v392 = vpop.f32.mrf.mxu0
        %v393 = vadd.f32 %v317, %v392
        %394 = vmatmul.f32.gmra.mxu0 %v340
        %v395 = vpop.f32.mrf.mxu0
        %v396 = vadd.f32 %v317, %v395
        %397 = vmatmul.f32.gmra.mxu0 %v343
        %v398 = vpop.f32.mrf.mxu0
        %v399 = vadd.f32 %v317, %v398
        %400 = vmatmul.f32.gmra.mxu0 %v346
        %v401 = vpop.f32.mrf.mxu0
        %v402 = vadd.f32 %v317, %v401
        %403 = vmatmul.f32.gmra.mxu0 %v349
        %v404 = vpop.f32.mrf.mxu0
        %v405 = vadd.f32 %v317, %v404
        %406 = vmatmul.f32.gmra.mxu0 %v352
        %v407 = vpop.f32.mrf.mxu0
        %v408 = vadd.f32 %v317, %v407
        %409 = vmatmul.f32.gmra.mxu0 %v355
        %v410 = vpop.f32.mrf.mxu0
        %v411 = vadd.f32 %v317, %v410
        %412 = vmatmul.f32.gmra.mxu0 %v358
        %v413 = vpop.f32.mrf.mxu0
        %v414 = vadd.f32 %v317, %v413
        %415 = vmatmul.f32.gmra.mxu0 %v361
        %v416 = vpop.f32.mrf.mxu0
        %v417 = vadd.f32 %v317, %v416
        %418 = vdwg.mxu0
        %419 = vmatpush.msra.mxu0 0.0
        %420 = vmatpush.msra.mxu0 0.0
        %421 = vmatpush.msra.mxu0 0.0
        %422 = vmatpush.msra.mxu0 0.0
        %423 = vmatpush.msra.mxu0 0.0
        %424 = vmatpush.msra.mxu0 0.0
        %425 = vmatpush.msra.mxu0 0.0
        %426 = vmatpush.msra.mxu0 0.0
        %427 = vmatpush.msra.mxu0 0.0
        %428 = vmatpush.msra.mxu0 0.0
        %429 = vmatpush.msra.mxu0 0.0
        %430 = vmatpush.msra.mxu0 0.0
        %431 = vmatpush.msra.mxu0 0.0
        %432 = vmatpush.msra.mxu0 0.0
        %433 = vmatpush.msra.mxu0 %v313
        %434 = vmatpush.msra.mxu0 %v310
        %435 = vmatmul.f32.gmra.mxu0 %v325
        %v436 = vpop.f32.mrf.mxu0
        %v437 = vadd.f32 %v318, %v436
        %438 = vmatmul.f32.gmra.mxu0 %v328
        %v439 = vpop.f32.mrf.mxu0
        %v440 = vadd.f32 %v318, %v439
        %441 = vmatmul.f32.gmra.mxu0 %v331
        %v442 = vpop.f32.mrf.mxu0
        %v443 = vadd.f32 %v318, %v442
        %444 = vmatmul.f32.gmra.mxu0 %v334
        %v445 = vpop.f32.mrf.mxu0
        %v446 = vadd.f32 %v318, %v445
        %447 = vmatmul.f32.gmra.mxu0 %v337
        %v448 = vpop.f32.mrf.mxu0
        %v449 = vadd.f32 %v318, %v448
        %450 = vmatmul.f32.gmra.mxu0 %v340
        %v451 = vpop.f32.mrf.mxu0
        %v452 = vadd.f32 %v318, %v451
        %453 = vmatmul.f32.gmra.mxu0 %v343
        %v454 = vpop.f32.mrf.mxu0
        %v455 = vadd.f32 %v318, %v454
        %456 = vmatmul.f32.gmra.mxu0 %v346
        %v457 = vpop.f32.mrf.mxu0
        %v458 = vadd.f32 %v318, %v457
        %459 = vmatmul.f32.gmra.mxu0 %v349
        %v460 = vpop.f32.mrf.mxu0
        %v461 = vadd.f32 %v318, %v460
        %462 = vmatmul.f32.gmra.mxu0 %v352
        %v463 = vpop.f32.mrf.mxu0
        %v464 = vadd.f32 %v318, %v463
        %465 = vmatmul.f32.gmra.mxu0 %v355
        %v466 = vpop.f32.mrf.mxu0
        %v467 = vadd.f32 %v318, %v466
        %468 = vmatmul.f32.gmra.mxu0 %v358
        %v469 = vpop.f32.mrf.mxu0
        %v470 = vadd.f32 %v318, %v469
        %471 = vmatmul.f32.gmra.mxu0 %v361
        %v472 = vpop.f32.mrf.mxu0
        %v473 = vadd.f32 %v318, %v472
        %474 = vdwg.mxu0
        %475 = vmatpush.msra.mxu0 0.0
        %476 = vmatpush.msra.mxu0 0.0
        %477 = vmatpush.msra.mxu0 0.0
        %478 = vmatpush.msra.mxu0 0.0
        %479 = vmatpush.msra.mxu0 0.0
        %480 = vmatpush.msra.mxu0 0.0
        %481 = vmatpush.msra.mxu0 0.0
        %482 = vmatpush.msra.mxu0 0.0
        %483 = vmatpush.msra.mxu0 0.0
        %484 = vmatpush.msra.mxu0 0.0
        %485 = vmatpush.msra.mxu0 0.0
        %486 = vmatpush.msra.mxu0 0.0
        %487 = vmatpush.msra.mxu0 0.0
        %488 = vmatpush.msra.mxu0 0.0
        %489 = vmatpush.msra.mxu0 %v314
        %490 = vmatpush.msra.mxu0 %v311
        %491 = vmatmul.f32.gmra.mxu0 %v325
        %v492 = vpop.f32.mrf.mxu0
        %v493 = vadd.f32 %v319, %v492
        %494 = vmatmul.f32.gmra.mxu0 %v328
        %v495 = vpop.f32.mrf.mxu0
        %v496 = vadd.f32 %v319, %v495
        %497 = vmatmul.f32.gmra.mxu0 %v331
        %v498 = vpop.f32.mrf.mxu0
        %v499 = vadd.f32 %v319, %v498
        %500 = vmatmul.f32.gmra.mxu0 %v334
        %v501 = vpop.f32.mrf.mxu0
        %v502 = vadd.f32 %v319, %v501
        %503 = vmatmul.f32.gmra.mxu0 %v337
        %v504 = vpop.f32.mrf.mxu0
        %v505 = vadd.f32 %v319, %v504
        %506 = vmatmul.f32.gmra.mxu0 %v340
        %v507 = vpop.f32.mrf.mxu0
        %v508 = vadd.f32 %v319, %v507
        %509 = vmatmul.f32.gmra.mxu0 %v343
        %v510 = vpop.f32.mrf.mxu0
        %v511 = vadd.f32 %v319, %v510
        %512 = vmatmul.f32.gmra.mxu0 %v346
        %v513 = vpop.f32.mrf.mxu0
        %v514 = vadd.f32 %v319, %v513
        %515 = vmatmul.f32.gmra.mxu0 %v349
        %v516 = vpop.f32.mrf.mxu0
        %v517 = vadd.f32 %v319, %v516
        %518 = vmatmul.f32.gmra.mxu0 %v352
        %v519 = vpop.f32.mrf.mxu0
        %v520 = vadd.f32 %v319, %v519
        %521 = vmatmul.f32.gmra.mxu0 %v355
        %v522 = vpop.f32.mrf.mxu0
        %v523 = vadd.f32 %v319, %v522
        %524 = vmatmul.f32.gmra.mxu0 %v358
        %v525 = vpop.f32.mrf.mxu0
        %v526 = vadd.f32 %v319, %v525
        %527 = vmatmul.f32.gmra.mxu0 %v361
        %v528 = vpop.f32.mrf.mxu0
        %v529 = vadd.f32 %v319, %v528
        %530 = vdwg.mxu0
        %v531 = vmax.f32 %v381, 0.0
        %v532 = vmax.f32 %v384, 0.0
        %v533 = vmax.f32 %v387, 0.0
        %v534 = vmax.f32 %v390, 0.0
        %v535 = vmax.f32 %v393, 0.0
        %v536 = vmax.f32 %v396, 0.0
        %v537 = vmax.f32 %v399, 0.0
        %v538 = vmax.f32 %v402, 0.0
        %v539 = vmax.f32 %v405, 0.0
        %v540 = vmax.f32 %v408, 0.0
        %v541 = vmax.f32 %v411, 0.0
        %v542 = vmax.f32 %v414, 0.0
        %v543 = vmax.f32 %v417, 0.0
        %v544 = vmul.f32 %v531, %v531
        %v545 = vmul.f32 %v532, %v532
        %v546 = vmul.f32 %v533, %v533
        %v547 = vmul.f32 %v534, %v534
        %v548 = vmul.f32 %v535, %v535
        %v549 = vmul.f32 %v536, %v536
        %v550 = vmul.f32 %v537, %v537
        %v551 = vmul.f32 %v538, %v538
        %v552 = vmul.f32 %v539, %v539
        %v553 = vmul.f32 %v540, %v540
        %v554 = vmul.f32 %v541, %v541
        %v555 = vmul.f32 %v542, %v542
        %v556 = vmul.f32 %v543, %v543
        %v557 = vld [vmem:[#allocation3] sm:$0xff]
        %v558 = vld [vmem:[#allocation3 + $0x8] sm:$0xff]
        %v559 = vld [vmem:[#allocation3 + $0x10] sm:$0xff]
        %v560 = vld [vmem:[#allocation3 + $0x18] sm:$0xff]
        %v561 = vld [vmem:[#allocation3 + $0x20] sm:$0xff]
        %v562 = vld [vmem:[#allocation3 + $0x28] sm:$0xff]
        %v563 = vld [vmem:[#allocation3 + $0x30] sm:$0xff]
        %v564 = vld [vmem:[#allocation3 + $0x38] sm:$0xff]
        %v565 = vld [vmem:[#allocation3 + $0x40] sm:$0xff]
        %v566 = vld [vmem:[#allocation3 + $0x48] sm:$0xff]
        %v567 = vld [vmem:[#allocation3 + $0x50] sm:$0xff]
        %v568 = vld [vmem:[#allocation3 + $0x58] sm:$0xff]
        %v569 = vld [vmem:[#allocation3 + $0x60] sm:$0xff]
        %v570 = vld [vmem:[#allocation3 + $0x68] sm:$0xff]
        %v571 = vld [vmem:[#allocation3 + $0x70] sm:$0xff]
        %v572 = vld [vmem:[#allocation3 + $0x78] sm:$0xff]
        %573 = vmatpush.msra.mxu0 %v572
        %574 = vmatpush.msra.mxu0 %v571
        %575 = vmatpush.msra.mxu0 %v570
        %576 = vmatpush.msra.mxu0 %v569
        %577 = vmatpush.msra.mxu0 %v568
        %578 = vmatpush.msra.mxu0 %v567
        %579 = vmatpush.msra.mxu0 %v566
        %580 = vmatpush.msra.mxu0 %v565
        %581 = vmatpush.msra.mxu0 %v564
        %582 = vmatpush.msra.mxu0 %v563
        %583 = vmatpush.msra.mxu0 %v562
        %584 = vmatpush.msra.mxu0 %v561
        %585 = vmatpush.msra.mxu0 %v560
        %586 = vmatpush.msra.mxu0 %v559
        %587 = vmatpush.msra.mxu0 %v558
        %588 = vmatpush.msra.mxu0 %v557
        %589 = vmatmul.f32.gmra.mxu0 %v544
        %v590 = vpop.f32.mrf.mxu0
        %v591 = vadd.f32 %v437, %v590
        %592 = vmatmul.f32.gmra.mxu0 %v545
        %v593 = vpop.f32.mrf.mxu0
        %v594 = vadd.f32 %v440, %v593
        %595 = vmatmul.f32.gmra.mxu0 %v546
        %v596 = vpop.f32.mrf.mxu0
        %v597 = vadd.f32 %v443, %v596
        %598 = vmatmul.f32.gmra.mxu0 %v547
        %v599 = vpop.f32.mrf.mxu0
        %v600 = vadd.f32 %v446, %v599
        %601 = vmatmul.f32.gmra.mxu0 %v548
        %v602 = vpop.f32.mrf.mxu0
        %v603 = vadd.f32 %v449, %v602
        %604 = vmatmul.f32.gmra.mxu0 %v549
        %v605 = vpop.f32.mrf.mxu0
        %v606 = vadd.f32 %v452, %v605
        %607 = vmatmul.f32.gmra.mxu0 %v550
        %v608 = vpop.f32.mrf.mxu0
        %v609 = vadd.f32 %v455, %v608
        %610 = vmatmul.f32.gmra.mxu0 %v551
        %v611 = vpop.f32.mrf.mxu0
        %v612 = vadd.f32 %v458, %v611
        %613 = vmatmul.f32.gmra.mxu0 %v552
        %v614 = vpop.f32.mrf.mxu0
        %v615 = vadd.f32 %v461, %v614
        %616 = vmatmul.f32.gmra.mxu0 %v553
        %v617 = vpop.f32.mrf.mxu0
        %v618 = vadd.f32 %v464, %v617
        %619 = vmatmul.f32.gmra.mxu0 %v554
        %v620 = vpop.f32.mrf.mxu0
        %v621 = vadd.f32 %v467, %v620
        %622 = vmatmul.f32.gmra.mxu0 %v555
        %v623 = vpop.f32.mrf.mxu0
        %v624 = vadd.f32 %v470, %v623
        %625 = vmatmul.f32.gmra.mxu0 %v556
        %v626 = vpop.f32.mrf.mxu0
        %v627 = vadd.f32 %v473, %v626
        %628 = vdwg.mxu0
        %v629 = vmax.f32 %v591, 0.0
        %v630 = vmax.f32 %v594, 0.0
        %v631 = vmax.f32 %v597, 0.0
        %v632 = vmax.f32 %v600, 0.0
        %v633 = vmax.f32 %v603, 0.0
        %v634 = vmax.f32 %v606, 0.0
        %v635 = vmax.f32 %v609, 0.0
        %v636 = vmax.f32 %v612, 0.0
        %v637 = vmax.f32 %v615, 0.0
        %v638 = vmax.f32 %v618, 0.0
        %v639 = vmax.f32 %v621, 0.0
        %v640 = vmax.f32 %v624, 0.0
        %v641 = vmax.f32 %v627, 0.0
        %s642 = scalar_lea.vmem [#allocation3], 128
        %v643 = vld [vmem:[%s642] sm:$0xff]
        %v644 = vld [vmem:[%s642 + $0x8] sm:$0xff]
        %v645 = vld [vmem:[%s642 + $0x10] sm:$0xff]
        %v646 = vld [vmem:[%s642 + $0x18] sm:$0xff]
        %v647 = vld [vmem:[%s642 + $0x20] sm:$0xff]
        %v648 = vld [vmem:[%s642 + $0x28] sm:$0xff]
        %v649 = vld [vmem:[%s642 + $0x30] sm:$0xff]
        %v650 = vld [vmem:[%s642 + $0x38] sm:$0xff]
        %v651 = vld [vmem:[%s642 + $0x40] sm:$0xff]
        %v652 = vld [vmem:[%s642 + $0x48] sm:$0xff]
        %v653 = vld [vmem:[%s642 + $0x50] sm:$0xff]
        %v654 = vld [vmem:[%s642 + $0x58] sm:$0xff]
        %v655 = vld [vmem:[%s642 + $0x60] sm:$0xff]
        %v656 = vld [vmem:[%s642 + $0x68] sm:$0xff]
        %v657 = vld [vmem:[%s642 + $0x70] sm:$0xff]
        %v658 = vld [vmem:[%s642 + $0x78] sm:$0xff]
        %659 = vmatpush.msra.mxu0 %v658
        %660 = vmatpush.msra.mxu0 %v657
        %661 = vmatpush.msra.mxu0 %v656
        %662 = vmatpush.msra.mxu0 %v655
        %663 = vmatpush.msra.mxu0 %v654
        %664 = vmatpush.msra.mxu0 %v653
        %665 = vmatpush.msra.mxu0 %v652
        %666 = vmatpush.msra.mxu0 %v651
        %667 = vmatpush.msra.mxu0 %v650
        %668 = vmatpush.msra.mxu0 %v649
        %669 = vmatpush.msra.mxu0 %v648
        %670 = vmatpush.msra.mxu0 %v647
        %671 = vmatpush.msra.mxu0 %v646
        %672 = vmatpush.msra.mxu0 %v645
        %673 = vmatpush.msra.mxu0 %v644
        %674 = vmatpush.msra.mxu0 %v643
        %675 = vmatmul.f32.gmra.mxu0 %v629
        %v676 = vpop.f32.mrf.mxu0
        %v677 = vadd.f32 %v493, %v676
        %678 = vmatmul.f32.gmra.mxu0 %v630
        %v679 = vpop.f32.mrf.mxu0
        %v680 = vadd.f32 %v496, %v679
        %681 = vmatmul.f32.gmra.mxu0 %v631
        %v682 = vpop.f32.mrf.mxu0
        %v683 = vadd.f32 %v499, %v682
        %684 = vmatmul.f32.gmra.mxu0 %v632
        %v685 = vpop.f32.mrf.mxu0
        %v686 = vadd.f32 %v502, %v685
        %687 = vmatmul.f32.gmra.mxu0 %v633
        %v688 = vpop.f32.mrf.mxu0
        %v689 = vadd.f32 %v505, %v688
        %690 = vmatmul.f32.gmra.mxu0 %v634
        %v691 = vpop.f32.mrf.mxu0
        %v692 = vadd.f32 %v508, %v691
        %693 = vmatmul.f32.gmra.mxu0 %v635
        %v694 = vpop.f32.mrf.mxu0
        %v695 = vadd.f32 %v511, %v694
        %696 = vmatmul.f32.gmra.mxu0 %v636
        %v697 = vpop.f32.mrf.mxu0
        %v698 = vadd.f32 %v514, %v697
        %699 = vmatmul.f32.gmra.mxu0 %v637
        %v700 = vpop.f32.mrf.mxu0
        %v701 = vadd.f32 %v517, %v700
        %702 = vmatmul.f32.gmra.mxu0 %v638
        %v703 = vpop.f32.mrf.mxu0
        %v704 = vadd.f32 %v520, %v703
        %705 = vmatmul.f32.gmra.mxu0 %v639
        %v706 = vpop.f32.mrf.mxu0
        %v707 = vadd.f32 %v523, %v706
        %708 = vmatmul.f32.gmra.mxu0 %v640
        %v709 = vpop.f32.mrf.mxu0
        %v710 = vadd.f32 %v526, %v709
        %711 = vmatmul.f32.gmra.mxu0 %v641
        %v712 = vpop.f32.mrf.mxu0
        %v713 = vadd.f32 %v529, %v712
        %714 = vdwg.mxu0
        %v715 = vmax.f32 %v677, 0.0
        %v716 = vmax.f32 %v680, 0.0
        %v717 = vmax.f32 %v683, 0.0
        %v718 = vmax.f32 %v686, 0.0
        %v719 = vmax.f32 %v689, 0.0
        %v720 = vmax.f32 %v692, 0.0
        %v721 = vmax.f32 %v695, 0.0
        %v722 = vmax.f32 %v698, 0.0
        %v723 = vmax.f32 %v701, 0.0
        %v724 = vmax.f32 %v704, 0.0
        %v725 = vmax.f32 %v707, 0.0
        %v726 = vmax.f32 %v710, 0.0
        %v727 = vmax.f32 %v713, 0.0
        %s728 = sld [smem:[#allocation2]]
        %v729 = vld [vmem:[%s5] sm:$0x1]
        %v730 = vstv %s728
        %v732 = vsel %vm323, %v729, 0
        %734 = vmatpush.xpose.msra.mxu0 0.0
        %735 = vmatpush.xpose.msra.mxu0 0.0
        %736 = vmatpush.xpose.msra.mxu0 0.0
        %737 = vmatpush.xpose.msra.mxu0 %v361
        %738 = vmatpush.xpose.msra.mxu0 %v358
        %739 = vmatpush.xpose.msra.mxu0 %v355
        %740 = vmatpush.xpose.msra.mxu0 %v352
        %741 = vmatpush.xpose.msra.mxu0 %v349
        %742 = vmatpush.xpose.msra.mxu0 %v346
        %743 = vmatpush.xpose.msra.mxu0 %v343
        %744 = vmatpush.xpose.msra.mxu0 %v340
        %745 = vmatpush.xpose.msra.mxu0 %v337
        %746 = vmatpush.xpose.msra.mxu0 %v334
        %747 = vmatpush.xpose.msra.mxu0 %v331
        %748 = vmatpush.xpose.msra.mxu0 %v328
        %749 = vmatpush.xpose.msra.mxu0 %v325
        %750 = vmatmul.f32.gmra.mxu0 %v732
        %v751 = vpop.f32.mrf.mxu0
        %v752 = vadd.f32 %v730, %v751
        %753 = vdwg.mxu0
        %v754 = vld [vmem:[%s4] sm:$0x1]
        %v755 = vmul.f32 %v752, %v752
        %756 = vmatpush.xpose.msra.mxu0 0.0
        %757 = vmatpush.xpose.msra.mxu0 0.0
        %758 = vmatpush.xpose.msra.mxu0 0.0
        %759 = vmatpush.xpose.msra.mxu0 %v727
        %760 = vmatpush.xpose.msra.mxu0 %v726
        %761 = vmatpush.xpose.msra.mxu0 %v725
        %762 = vmatpush.xpose.msra.mxu0 %v724
        %763 = vmatpush.xpose.msra.mxu0 %v723
        %764 = vmatpush.xpose.msra.mxu0 %v722
        %765 = vmatpush.xpose.msra.mxu0 %v721
        %766 = vmatpush.xpose.msra.mxu0 %v720
        %767 = vmatpush.xpose.msra.mxu0 %v719
        %768 = vmatpush.xpose.msra.mxu0 %v718
        %769 = vmatpush.xpose.msra.mxu0 %v717
        %770 = vmatpush.xpose.msra.mxu0 %v716
        %771 = vmatpush.xpose.msra.mxu0 %v715
        %772 = vmatmul.f32.gmra.mxu0 %v754
        %v773 = vpop.f32.mrf.mxu0
        %v774 = vadd.f32 %v755, %v773
        %775 = vdwg.mxu0
        %vm776 = vcmask 843776
        %777 = vst.msk [vmem:[%s289] sm:$0x1] %vm776, %v774
        %s778 = sand.u32 %s183, 1
        %s779 = scalar_lea.sflag [#allocation5], %s778
        %s780 = sand.u32 %s183, 1
        %s781 = scalar_lea.vmem [#allocation6], %s780
        // Predicated region
        $region53: #{tpu_custom_call.1} parent=47 // pred_check
          %p782 = pneg %p193
        $region54: #{tpu_custom_call.1} parent=47 // pred_check_branch
          %784 = sbr.rel (%p782) target = $region56
        $region55: #{tpu_custom_call.1} parent=47 // pred_region
          %786 = vsyncadd %s779, 0
          %s787 = scalar_lea.hbm %s7, %s23
          %s789 = sshll.u32 %s781, 4
          %s790 = int_to_ptr.vmem [resolvable:$true] %s789
          %s791 = sshll.u32 %s787, 4
          %s792 = int_to_ptr.hbm [resolvable:$true] %s791
          %794 = dma.vmem_to_hbm [thread:$0]  %s790, 16, %s792, %s779
        $region56: #{tpu_custom_call.1} parent=47 // pred_fallthru
          _
      $region48: #{tpu_custom_call.1} parent=5 // pred_fallthru
        _
      %p795 = scmp.le.s32.totalorder 2, %s18
      // Predicated region
      $region57: #{tpu_custom_call.1} parent=5 // pred_check
        %p796 = pneg %p795
      $region58: #{tpu_custom_call.1} parent=5 // pred_check_branch
        %798 = sbr.rel (%p796) target = $region60
      $region59: #{tpu_custom_call.1} parent=5 // pred_region
        %s799 = ssub.s32 %s18, 2
        // Predicated region
        $region61: #{tpu_custom_call.1} parent=59 // pred_check
          %p800 = pneg %p199
        $region62: #{tpu_custom_call.1} parent=59 // pred_check_branch
          %802 = sbr.rel (%p800) target = $region64
        $region63: #{tpu_custom_call.1} parent=59 // pred_region
          %s803 = sand.u32 %s184, 1
          %s804 = scalar_lea.sflag [#allocation5], %s803
          %s805 = sand.u32 %s184, 1
          %s806 = scalar_lea.vmem [#allocation6], %s805
          %808 = dma.done %s804, 16
        $region64: #{tpu_custom_call.1} parent=59 // pred_fallthru
          _
      $region60: #{tpu_custom_call.1} parent=5 // pred_fallthru
        _
    $region6: #{tpu_custom_call.1} parent=1 // loop_footer
      %s22 = sadd.s32 1, %s18
    $region7: #{tpu_custom_call.1} parent=1 // loop_footer_branch
      %17 = sbr.rel target = $region3
    $region8: #{tpu_custom_call.1} parent=1 // loop_exit
      _
    %809 = vsyncpa [#allocation4], 1
    %s810 = scalar_lea.sflag [#allocation4], 1
    %811 = vsyncpa %s810, 1
    %812 = vsyncpa [#allocation5], 1
    %s813 = scalar_lea.sflag [#allocation5], 1
    %814 = vsyncpa %s813, 1

</llo_original>
